<compile_context>
chip_gen: v6e
topology: v6e:2x2x1
jax: 0.10.0
libtpu: 0.0.40
codegen_flags: <defaults>
</compile_context>

<pallas_src>
import functools

import jax
import jax.numpy as jnp
import numpy as np
from jax.experimental import pallas as pl
from jax.experimental.pallas import tpu as pltpu

LN_EPS = 1e-5
_H_CHUNK = 512          # lanes per hidden-dim chunk inside the kernel


def _round_up(x, m):
  return (x + m - 1) // m * m


def _mxu_pad():
  """Matmul N/K padding: 256 on v6e/v7x (256x256 MXU), 128 on older chips."""
  try:
    kind = jax.devices()[0].device_kind.lower()
  except Exception:
    return 128
  if any(t in kind for t in ("v2", "v3", "v4", "v5")):
    return 128
  return 256


@functools.lru_cache(maxsize=1)
def _vmem_cap_bytes():
  """Physical per-core VMEM for this generation (v5e/v6e 128 MiB, v7x 64 MiB)."""
  try:
    return int(pltpu.get_tpu_info().vmem_capacity_bytes)
  except Exception:
    try:
      kind = jax.devices()[0].device_kind.lower()
    except Exception:
      kind = ""
    return (64 << 20) if "v7" in kind else (128 << 20)


def _buffered_ok():
  if not hasattr(pl, "Buffered"):
    return False
  try:
    pl.BlockSpec((8, 128), lambda i: (0, 0), pipeline_mode=pl.Buffered(1))
    return True
  except Exception:
    return False


_BUFFERED_OK = _buffered_ok()


def _hidden_chunking(h_pad):
  if h_pad <= _H_CHUNK:
    return h_pad, 1
  assert h_pad % _H_CHUNK == 0
  return _H_CHUNK, h_pad // _H_CHUNK


def _prenorm_ff_kernel(x_ref, g_ref, b_ref, w1_ref, b1_ref, w2_ref, b2_ref,
                       o_ref, *, h_chunk, n_chunks):
  """LayerNorm (f32 stats) -> Linear -> GELU -> Linear, hidden dim chunked."""
  x = x_ref[...].astype(jnp.float32)                     # (tm, D)

  # Single-pass LayerNorm statistics: var = E[x^2] - mean^2 (one fewer full
  # (tm, D) VALU pass; both XLU reductions issue from the same loaded vregs).
  mean = jnp.mean(x, axis=-1, keepdims=True)
  mean_sq = jnp.mean(x * x, axis=-1, keepdims=True)
  var = jnp.maximum(mean_sq - mean * mean, 0.0)
  xn = (x - mean) * jax.lax.rsqrt(var + LN_EPS)
  xn = xn * g_ref[...] + b_ref[...]                      # affine (1, D)
  xn_c = xn.astype(w1_ref.dtype)                         # bf16 MXU operand

  tm = x.shape[0]
  d_out = o_ref.shape[-1]

  def ffn_chunk(w1c, b1c, w2c):
    hc = jnp.dot(xn_c, w1c, preferred_element_type=jnp.float32) + b1c
    # tanh-GELU: the transcendental issues on the otherwise-idle EUP slot.
    # Deviates from torch's exact erf GELU by <~3e-4 (below bf16 noise floor).
    hc = jax.nn.gelu(hc, approximate=True)
    return jnp.dot(hc.astype(w2c.dtype), w2c,
                   preferred_element_type=jnp.float32)

  if n_chunks == 1:
    acc = ffn_chunk(w1_ref[...], b1_ref[...], w2_ref[...])
  else:
    def body(c, acc):
      start = pl.multiple_of(c * h_chunk, h_chunk)
      return acc + ffn_chunk(w1_ref[:, pl.ds(start, h_chunk)],
                             b1_ref[:, pl.ds(start, h_chunk)],
                             w2_ref[pl.ds(start, h_chunk), :])
    acc = jax.lax.fori_loop(0, n_chunks, body,
                            jnp.zeros((tm, d_out), jnp.float32),
                            unroll=n_chunks <= 8)

  o_ref[...] = (acc + b2_ref[...]).astype(o_ref.dtype)


@functools.partial(
    jax.jit, static_argnames=("tm", "single_buffer_weights", "out_dtype"))
def _prenorm_ff_call(x2, gamma, beta, w1, b1, w2, b2, *, tm,
                     single_buffer_weights, out_dtype):
  rows_p, D = x2.shape
  H_pad = w1.shape[1]
  D_out = w2.shape[1]
  assert rows_p % tm == 0
  h_chunk, n_chunks = _hidden_chunking(H_pad)

  # Resident (constant index_map) operands: single-buffer when supported.
  wmode = ({"pipeline_mode": pl.Buffered(1)} if single_buffer_weights else {})

  # VMEM budget:
  #   * resident weights/biases: exact, no headroom multiplier (x1 or x2 bufs)
  #   * double-buffered activation in/out tiles
  #   * f32/bf16 intermediates + chunk accumulator: 2x headroom for temps
  # Clamped to 85% of this generation's physical per-core VMEM.
  out_itemsize = np.dtype(out_dtype).itemsize
  n_wbuf = 1 if single_buffer_weights else 2
  w_bytes = (w1.size * w1.dtype.itemsize + w2.size * w2.dtype.itemsize
             + (b1.size + b2.size + gamma.size + beta.size) * 4)
  act_bytes = (2 * tm * D * x2.dtype.itemsize
               + 2 * tm * D_out * out_itemsize)
  inter_bytes = (tm * D * (4 + 4 + 2)        # x f32, xn f32, xn bf16
                 + tm * h_chunk * (4 + 2)    # hidden chunk f32 + bf16
                 + tm * D_out * 4)           # f32 accumulator
  cap85 = int(0.85 * _vmem_cap_bytes())
  vmem_limit = n_wbuf * w_bytes + act_bytes + 2 * inter_bytes + (4 << 20)
  vmem_limit = min(vmem_limit, cap85)
  vmem_limit = max(vmem_limit, min(32 << 20, cap85))

  kernel = functools.partial(_prenorm_ff_kernel,
                             h_chunk=h_chunk, n_chunks=n_chunks)

  return pl.pallas_call(
      kernel,
      out_shape=jax.ShapeDtypeStruct((rows_p, D_out), out_dtype),
      grid_spec=pltpu.PrefetchScalarGridSpec(
          num_scalar_prefetch=0,
          grid=(rows_p // tm,),
          in_specs=[
              pl.BlockSpec((tm, D), lambda i: (i, 0)),                  # x
              pl.BlockSpec((1, D), lambda i: (0, 0), **wmode),          # gamma
              pl.BlockSpec((1, D), lambda i: (0, 0), **wmode),          # beta
              pl.BlockSpec((D, H_pad), lambda i: (0, 0), **wmode),      # W1
              pl.BlockSpec((1, H_pad), lambda i: (0, 0), **wmode),      # b1
              pl.BlockSpec((H_pad, D_out), lambda i: (0, 0), **wmode),  # W2
              pl.BlockSpec((1, D_out), lambda i: (0, 0), **wmode),      # b2
          ],
          out_specs=pl.BlockSpec((tm, D_out), lambda i: (i, 0)),
      ),
      compiler_params=pltpu.CompilerParams(
          dimension_semantics=("parallel",),
          vmem_limit_bytes=int(vmem_limit),
      ),
  )(x2, gamma, beta, w1, b1, w2, b2)


def prenorm_feedforward(x, gamma, beta, w1, b1, w2, b2, *, tm=512,
                        compute_dtype=jnp.bfloat16, out_dtype=None):
  """PreNorm(dim, FeedForward(dim, H), nn.LayerNorm): returns fn(norm(x)).

  x: [B, N, D]; w1: [D, H]; b1: [H]; w2: [H, D]; b2: [D]. Output [B, N, D].
  """
  B, N, D = x.shape
  H = w1.shape[1]
  rows = B * N
  out_dtype = np.dtype(x.dtype if out_dtype is None else out_dtype)
  cd = np.dtype(compute_dtype)

  # Lane/MXU-dense padded dims (exact math: padded W1 cols give GELU(0)=0,
  # padded W2 rows contribute nothing, padded W2 cols are sliced off).
  mxu = _mxu_pad()
  H_pad = _round_up(H, mxu)
  if H_pad > _H_CHUNK:
    H_pad = _round_up(H_pad, _H_CHUNK)      # so in-kernel chunking divides H_pad
  D_out = _round_up(D, mxu)
  h_chunk, _ = _hidden_chunking(H_pad)

  # Row tile: large (MXU-friendly, multiple of 16 for bf16 sublane packing),
  # never larger than the (16-aligned) token count, shrunk if the per-core
  # VMEM budget (resident weights + tiles) would not fit this generation.
  tm_eff = min(tm, _round_up(rows, 16))
  cap85 = int(0.85 * _vmem_cap_bytes())
  w_resident = ((D * H_pad + H_pad * D_out) * cd.itemsize
                + (H_pad + 2 * D + D_out) * 4)

  def _tile_bytes(t):
    return (2 * t * D * cd.itemsize + 2 * t * D_out * out_dtype.itemsize
            + 2 * (t * D * 10 + t * h_chunk * 6 + t * D_out * 4))

  while tm_eff > 128 and w_resident + _tile_bytes(tm_eff) > cap85:
    tm_eff = max(128, _round_up(tm_eff // 2, 16))
  rows_p = _round_up(rows, tm_eff)

  # Stream activations in bf16 (halves input HBM traffic); LN stats stay f32
  # inside the kernel.  Padded rows are zero -> normalize to beta, sliced off.
  x2 = x.reshape(rows, D).astype(cd)
  if rows_p != rows:
    x2 = jnp.pad(x2, ((0, rows_p - rows), (0, 0)))

  g = gamma.reshape(1, D).astype(jnp.float32)
  bt = beta.reshape(1, D).astype(jnp.float32)
  w1p = jnp.pad(w1, ((0, 0), (0, H_pad - H))).astype(cd)
  b1p = jnp.pad(b1, (0, H_pad - H)).reshape(1, H_pad).astype(jnp.float32)
  w2p = jnp.pad(w2, ((0, H_pad - H), (0, D_out - D))).astype(cd)
  b2p = jnp.pad(b2, (0, D_out - D)).reshape(1, D_out).astype(jnp.float32)

  try:
    out = _prenorm_ff_call(x2, g, bt, w1p, b1p, w2p, b2p, tm=tm_eff,
                           single_buffer_weights=_BUFFERED_OK,
                           out_dtype=out_dtype)
  except Exception as e:
    # Narrow fallback: only retry (with default double buffering) if the
    # failure is specifically about pl.Buffered(1); anything else re-raises.
    msg = str(e)
    if _BUFFERED_OK and any(s in msg for s in
                            ("Buffered", "pipeline_mode", "buffer_count")):
      out = _prenorm_ff_call(x2, g, bt, w1p, b1p, w2p, b2p, tm=tm_eff,
                             single_buffer_weights=False, out_dtype=out_dtype)
    else:
      raise

  return out[:rows, :D].reshape(B, N, D)


def _reference(x, gamma, beta, w1, b1, w2, b2, compute_dtype=jnp.bfloat16,
               out_dtype=None):
  """Pure-JAX reference with the same dtype semantics as the kernel."""
  out_dtype = x.dtype if out_dtype is None else out_dtype
  xf = x.astype(compute_dtype).astype(jnp.float32)      # bf16-streamed input
  mean = jnp.mean(xf, axis=-1, keepdims=True)
  var = jnp.mean((xf - mean) ** 2, axis=-1, keepdims=True)
  xn = (xf - mean) * jax.lax.rsqrt(var + LN_EPS) * gamma + beta
  h = jnp.dot(xn.astype(compute_dtype), w1.astype(compute_dtype),
              preferred_element_type=jnp.float32) + b1
  h = jax.nn.gelu(h, approximate=True)
  y = jnp.dot(h.astype(compute_dtype), w2.astype(compute_dtype),
              preferred_element_type=jnp.float32) + b2
  return y.astype(out_dtype)


if __name__ == "__main__":
  key = jax.random.PRNGKey(0)
  kx, k1, k2, kx2, k3, k4 = jax.random.split(key, 6)

  # Small shapes consistent with a CoAtNet transformer block.
  B, N, D, H = 2, 8, 32, 64
  x = jax.random.normal(kx, (B, N, D), dtype=jnp.float32)
  gamma = jnp.ones((D,), jnp.float32)
  beta = jnp.zeros((D,), jnp.float32)
  w1 = 0.02 * jax.random.normal(k1, (D, H), dtype=jnp.float32)
  b1 = jnp.zeros((H,), jnp.float32)
  w2 = 0.02 * jax.random.normal(k2, (H, D), dtype=jnp.float32)
  b2 = jnp.zeros((D,), jnp.float32)

  y = prenorm_feedforward(x, gamma, beta, w1, b1, w2, b2)
  jax.block_until_ready(y)
  y_ref = _reference(x, gamma, beta, w1, b1, w2, b2)
  assert jnp.allclose(y, y_ref, atol=2e-3, rtol=2e-3), "mismatch (small case)"

  # Second case: ragged rows (multi-step grid) + multi-chunk hidden dim.
  # rows=600 -> tm=512, 2 row tiles; H=1000 -> H_pad=1024 -> 2 hidden chunks.
  B2, N2, D2, H2 = 2, 300, 128, 1000
  x_b = jax.random.normal(kx2, (B2, N2, D2), dtype=jnp.float32)
  gamma_b = 1.0 + 0.1 * jax.random.normal(k3, (D2,), dtype=jnp.float32)
  beta_b = 0.1 * jax.random.normal(k4, (D2,), dtype=jnp.float32)
  w1_b = 0.02 * jax.random.normal(k1, (D2, H2), dtype=jnp.float32)
  b1_b = 0.01 * jnp.ones((H2,), jnp.float32)
  w2_b = 0.02 * jax.random.normal(k2, (H2, D2), dtype=jnp.float32)
  b2_b = 0.01 * jnp.ones((D2,), jnp.float32)

  y_b = prenorm_feedforward(x_b, gamma_b, beta_b, w1_b, b1_b, w2_b, b2_b)
  jax.block_until_ready(y_b)
  y_b_ref = _reference(x_b, gamma_b, beta_b, w1_b, b1_b, w2_b, b2_b)
  assert jnp.allclose(y_b, y_b_ref, atol=2e-3, rtol=2e-3), "mismatch (tiled)"

  print("KERNEL_OK")
</pallas_src>

<mosaic_0001>
module attributes {stable_mosaic.version = 11 : i64} {
  func.func @_prenorm_ff_kernel(%arg0: i32, %arg1: memref<16x32xbf16, #tpu.memory_space<vmem>>, %arg2: memref<1x32xf32, #tpu.memory_space<vmem>>, %arg3: memref<1x32xf32, #tpu.memory_space<vmem>>, %arg4: memref<32x256xbf16, #tpu.memory_space<vmem>>, %arg5: memref<1x256xf32, #tpu.memory_space<vmem>>, %arg6: memref<256x256xbf16, #tpu.memory_space<vmem>>, %arg7: memref<1x256xf32, #tpu.memory_space<vmem>>, %arg8: memref<16x256xf32, #tpu.memory_space<vmem>>) attributes {dimension_semantics = [#tpu.dimension_semantics<parallel>], iteration_bounds = array<i64: 1>, scalar_prefetch = 0 : i64, scratch_operands = 0 : i64, tpu.core_type = #tpu.core_type<tc>, window_params = [{transform_indices = @transform_0, window_bounds = array<i64: 16, 32>}, {pipeline_mode = #tpu.pipeline_mode<synchronous>, transform_indices = @transform_1, window_bounds = array<i64: 1, 32>}, {pipeline_mode = #tpu.pipeline_mode<synchronous>, transform_indices = @transform_2, window_bounds = array<i64: 1, 32>}, {pipeline_mode = #tpu.pipeline_mode<synchronous>, transform_indices = @transform_3, window_bounds = array<i64: 32, 256>}, {pipeline_mode = #tpu.pipeline_mode<synchronous>, transform_indices = @transform_4, window_bounds = array<i64: 1, 256>}, {pipeline_mode = #tpu.pipeline_mode<synchronous>, transform_indices = @transform_5, window_bounds = array<i64: 256, 256>}, {pipeline_mode = #tpu.pipeline_mode<synchronous>, transform_indices = @transform_6, window_bounds = array<i64: 1, 256>}, {transform_indices = @transform_7, window_bounds = array<i64: 16, 256>}]} {
    %c0 = arith.constant 0 : index
    %c0_0 = arith.constant 0 : index
    %0 = vector.load %arg1[%c0, %c0_0] : memref<16x32xbf16, #tpu.memory_space<vmem>>, vector<16x32xbf16>
    %1 = arith.extf %0 : vector<16x32xbf16> to vector<16x32xf32>
    %cst = arith.constant dense<0.000000e+00> : vector<16xf32>
    %2 = vector.multi_reduction <add>, %1, %cst [1] : vector<16x32xf32> to vector<16xf32>
    %3 = vector.shape_cast %2 : vector<16xf32> to vector<16x1xf32>
    %cst_1 = arith.constant 3.200000e+01 : f32
    %4 = vector.broadcast %cst_1 : f32 to vector<16x1xf32>
    %5 = arith.divf %3, %4 : vector<16x1xf32>
    %6 = arith.mulf %1, %1 : vector<16x32xf32>
    %cst_2 = arith.constant dense<0.000000e+00> : vector<16xf32>
    %7 = vector.multi_reduction <add>, %6, %cst_2 [1] : vector<16x32xf32> to vector<16xf32>
    %8 = vector.shape_cast %7 : vector<16xf32> to vector<16x1xf32>
    %cst_3 = arith.constant 3.200000e+01 : f32
    %9 = vector.broadcast %cst_3 : f32 to vector<16x1xf32>
    %10 = arith.divf %8, %9 : vector<16x1xf32>
    %11 = arith.mulf %5, %5 : vector<16x1xf32>
    %12 = arith.subf %10, %11 : vector<16x1xf32>
    %cst_4 = arith.constant 0.000000e+00 : f32
    %13 = vector.broadcast %cst_4 : f32 to vector<16x1xf32>
    %14 = arith.maximumf %12, %13 : vector<16x1xf32>
    %15 = vector.broadcast %5 : vector<16x1xf32> to vector<16x32xf32>
    %16 = arith.subf %1, %15 : vector<16x32xf32>
    %cst_5 = arith.constant 9.99999974E-6 : f32
    %17 = vector.broadcast %cst_5 : f32 to vector<16x1xf32>
    %18 = arith.addf %14, %17 : vector<16x1xf32>
    %19 = math.rsqrt %18 : vector<16x1xf32>
    %20 = vector.broadcast %19 : vector<16x1xf32> to vector<16x32xf32>
    %21 = arith.mulf %16, %20 : vector<16x32xf32>
    %c0_6 = arith.constant 0 : index
    %c0_7 = arith.constant 0 : index
    %22 = vector.load %arg2[%c0_6, %c0_7] : memref<1x32xf32, #tpu.memory_space<vmem>>, vector<1x32xf32>
    %23 = vector.broadcast %22 : vector<1x32xf32> to vector<16x32xf32>
    %24 = arith.mulf %21, %23 : vector<16x32xf32>
    %c0_8 = arith.constant 0 : index
    %c0_9 = arith.constant 0 : index
    %25 = vector.load %arg3[%c0_8, %c0_9] : memref<1x32xf32, #tpu.memory_space<vmem>>, vector<1x32xf32>
    %26 = vector.broadcast %25 : vector<1x32xf32> to vector<16x32xf32>
    %27 = arith.addf %24, %26 : vector<16x32xf32>
    %28 = arith.truncf %27 : vector<16x32xf32> to vector<16x32xbf16>
    %c0_10 = arith.constant 0 : index
    %c0_11 = arith.constant 0 : index
    %29 = vector.load %arg4[%c0_10, %c0_11] : memref<32x256xbf16, #tpu.memory_space<vmem>>, vector<32x256xbf16>
    %c0_12 = arith.constant 0 : index
    %c0_13 = arith.constant 0 : index
    %30 = vector.load %arg5[%c0_12, %c0_13] : memref<1x256xf32, #tpu.memory_space<vmem>>, vector<1x256xf32>
    %c0_14 = arith.constant 0 : index
    %c0_15 = arith.constant 0 : index
    %31 = vector.load %arg6[%c0_14, %c0_15] : memref<256x256xbf16, #tpu.memory_space<vmem>>, vector<256x256xbf16>
    %cst_16 = arith.constant dense<0.000000e+00> : vector<16x256xf32>
    %32 = tpu.matmul %28, %29, %cst_16 {dimension_numbers = #tpu.dot_dimension_numbers<[1], [0], [0], [1], [0, 0, 1, 1], [], []>} : vector<16x32xbf16>, vector<32x256xbf16>, vector<16x256xf32> -> vector<16x256xf32>
    %33 = vector.broadcast %30 : vector<1x256xf32> to vector<16x256xf32>
    %34 = arith.addf %32, %33 : vector<16x256xf32>
    %35 = arith.mulf %34, %34 : vector<16x256xf32>
    %36 = arith.mulf %34, %35 : vector<16x256xf32>
    %cst_17 = arith.constant 4.471500e-02 : f32
    %37 = vector.broadcast %cst_17 : f32 to vector<16x256xf32>
    %38 = arith.mulf %37, %36 : vector<16x256xf32>
    %39 = arith.addf %34, %38 : vector<16x256xf32>
    %cst_18 = arith.constant 0.797884583 : f32
    %40 = vector.broadcast %cst_18 : f32 to vector<16x256xf32>
    %41 = arith.mulf %40, %39 : vector<16x256xf32>
    %42 = math.tanh %41 : vector<16x256xf32>
    %cst_19 = arith.constant 1.000000e+00 : f32
    %43 = vector.broadcast %cst_19 : f32 to vector<16x256xf32>
    %44 = arith.addf %43, %42 : vector<16x256xf32>
    %cst_20 = arith.constant 5.000000e-01 : f32
    %45 = vector.broadcast %cst_20 : f32 to vector<16x256xf32>
    %46 = arith.mulf %45, %44 : vector<16x256xf32>
    %47 = arith.mulf %34, %46 : vector<16x256xf32>
    %48 = arith.truncf %47 : vector<16x256xf32> to vector<16x256xbf16>
    %cst_21 = arith.constant dense<0.000000e+00> : vector<16x256xf32>
    %49 = tpu.matmul %48, %31, %cst_21 {dimension_numbers = #tpu.dot_dimension_numbers<[1], [0], [0], [1], [0, 0, 1, 1], [], []>} : vector<16x256xbf16>, vector<256x256xbf16>, vector<16x256xf32> -> vector<16x256xf32>
    %c0_22 = arith.constant 0 : index
    %c0_23 = arith.constant 0 : index
    %50 = vector.load %arg7[%c0_22, %c0_23] : memref<1x256xf32, #tpu.memory_space<vmem>>, vector<1x256xf32>
    %51 = vector.broadcast %50 : vector<1x256xf32> to vector<16x256xf32>
    %52 = arith.addf %49, %51 : vector<16x256xf32>
    %c0_24 = arith.constant 0 : index
    %c0_25 = arith.constant 0 : index
    %53 = vector.load %arg8[%c0_24, %c0_25] : memref<16x256xf32, #tpu.memory_space<vmem>>, vector<16x256xf32>
    tpu.vector_store %arg8[%c0_24, %c0_25], %52 {strides = array<i32>} : memref<16x256xf32, #tpu.memory_space<vmem>>, vector<16x256xf32>,
    return
  }
  func.func @transform_0(%arg0: i32) -> (i32, i32) {
    %c0_i32 = arith.constant 0 : i32
    %c0_i32_0 = arith.constant 0 : i32
    return %arg0, %c0_i32 : i32, i32
  }
  func.func @transform_1(%arg0: i32) -> (i32, i32) {
    %c0_i32 = arith.constant 0 : i32
    %c0_i32_0 = arith.constant 0 : i32
    %c0_i32_1 = arith.constant 0 : i32
    return %c0_i32, %c0_i32_0 : i32, i32
  }
  func.func @transform_2(%arg0: i32) -> (i32, i32) {
    %c0_i32 = arith.constant 0 : i32
    %c0_i32_0 = arith.constant 0 : i32
    %c0_i32_1 = arith.constant 0 : i32
    return %c0_i32, %c0_i32_0 : i32, i32
  }
  func.func @transform_3(%arg0: i32) -> (i32, i32) {
    %c0_i32 = arith.constant 0 : i32
    %c0_i32_0 = arith.constant 0 : i32
    %c0_i32_1 = arith.constant 0 : i32
    return %c0_i32, %c0_i32_0 : i32, i32
  }
  func.func @transform_4(%arg0: i32) -> (i32, i32) {
    %c0_i32 = arith.constant 0 : i32
    %c0_i32_0 = arith.constant 0 : i32
    %c0_i32_1 = arith.constant 0 : i32
    return %c0_i32, %c0_i32_0 : i32, i32
  }
  func.func @transform_5(%arg0: i32) -> (i32, i32) {
    %c0_i32 = arith.constant 0 : i32
    %c0_i32_0 = arith.constant 0 : i32
    %c0_i32_1 = arith.constant 0 : i32
    return %c0_i32, %c0_i32_0 : i32, i32
  }
  func.func @transform_6(%arg0: i32) -> (i32, i32) {
    %c0_i32 = arith.constant 0 : i32
    %c0_i32_0 = arith.constant 0 : i32
    %c0_i32_1 = arith.constant 0 : i32
    return %c0_i32, %c0_i32_0 : i32, i32
  }
  func.func @transform_7(%arg0: i32) -> (i32, i32) {
    %c0_i32 = arith.constant 0 : i32
    %c0_i32_0 = arith.constant 0 : i32
    return %arg0, %c0_i32 : i32, i32
  }
}

</mosaic_0001>

<llo_original>
// kernel: _prenorm_ff_call.1
$region0: #{_prenorm_ff_call.1}
  #allocation0 [shape = 'u32[]', space=smem, size = 0x4, offset = 0x4, fixed_abs, tag = 'smem constant byte address 0x4 - core index']
  #allocation1 [shape = 'u32[144,128]{1,0:T(1,128)}', space=vmem, size = 0x12000, scoped, tag = 'internal scratch']
  %s0 = inlined_call_operand.hbm [shape: bf16[16,32], index: 0, kind: input, shape index: {}]
  %s1 = inlined_call_operand.vmem [shape: f32[1,32], index: 1, kind: input, shape index: {}]
  %s2 = inlined_call_operand.hbm [shape: f32[1,32], index: 2, kind: input, shape index: {}]
  %s3 = inlined_call_operand.hbm [shape: bf16[32,256], index: 3, kind: input, shape index: {}]
  %s4 = inlined_call_operand.vmem [shape: f32[1,256], index: 4, kind: input, shape index: {}]
  %s5 = inlined_call_operand.hbm [shape: bf16[256,256], index: 5, kind: input, shape index: {}]
  %s6 = inlined_call_operand.vmem [shape: f32[1,256], index: 6, kind: input, shape index: {}]
  %s7 = inlined_call_operand.hbm [shape: f32[16,256], index: 7, kind: output, shape index: {}]
  %s8 = sld [smem:[#allocation0]]
  $region54: #{_prenorm_ff_call.1} parent=0
    _
  %s10 = ssub.s32 1, %s8
  %s11 = scalar_select 0, %s10, %s8
  $region1: #{_prenorm_ff_call.1} parent=0
    #allocation2 [shape = 'u8[4096]{0}', space=vmem, size = 0x1000, scoped, tag = 'input window, operand 0, single buffered']
    #allocation3 [shape = 's32[1]{0}', space=sflag, size = 0x4, scoped, tag = 'scoped memory for _prenorm_ff_call.1']
    #allocation4 [shape = 's32[1]{0}', space=sflag, size = 0x4, scoped, tag = 'scoped memory for _prenorm_ff_call.1']
    #allocation5 [shape = 'u8[512]{0}', space=vmem, size = 0x400, scoped, tag = 'input window, operand 2, single buffered']
    #allocation6 [shape = 's32[1]{0}', space=sflag, size = 0x4, scoped, tag = 'scoped memory for _prenorm_ff_call.1']
    #allocation7 [shape = 'u8[16384]{0}', space=vmem, size = 0x4000, scoped, tag = 'input window, operand 3, single buffered']
    #allocation8 [shape = 'u8[131072]{0}', space=vmem, size = 0x20000, scoped, tag = 'input window, operand 5, single buffered']
    #allocation9 [shape = 's32[1]{0}', space=sflag, size = 0x4, scoped, tag = 'scoped memory for _prenorm_ff_call.1']
    #allocation10 [shape = 'u8[16384]{0}', space=vmem, size = 0x4000, scoped, tag = 'output window, operand 0, single buffered']
    %12 = vsyncpa [#allocation3], 0
    %13 = vsyncpa [#allocation6], 0
    %14 = vsyncpa [#allocation9], 0
    %15 = vsyncpa [#allocation4], 0
    // Predicated region
    $region2: #{_prenorm_ff_call.1} parent=1 // pred_check
      _
    $region3: #{_prenorm_ff_call.1} parent=1 // pred_check_branch
      %17 = sbr.rel (0) target = $region5
    $region4: #{_prenorm_ff_call.1} parent=1 // pred_region
      %s19 = ssub.s32 128, 128
      %20 = vsyncadd [#allocation3], %s19
      %s21 = sshll.u32 [#allocation2], 4
      %s22 = int_to_ptr.vmem [resolvable:$true] %s21
      %27 = dma.hbm_to_vmem [thread:$0]  %s0, 128, %s22, [#allocation3], 64, 64, 4
    $region5: #{_prenorm_ff_call.1} parent=1 // pred_fallthru
      _
    // Predicated region
    $region6: #{_prenorm_ff_call.1} parent=1 // pred_check
      _
    $region7: #{_prenorm_ff_call.1} parent=1 // pred_check_branch
      %29 = sbr.rel (0) target = $region9
    $region8: #{_prenorm_ff_call.1} parent=1 // pred_region
      _
    $region9: #{_prenorm_ff_call.1} parent=1 // pred_fallthru
      _
    // Predicated region
    $region10: #{_prenorm_ff_call.1} parent=1 // pred_check
      _
    $region11: #{_prenorm_ff_call.1} parent=1 // pred_check_branch
      %31 = sbr.rel (0) target = $region13
    $region12: #{_prenorm_ff_call.1} parent=1 // pred_region
      %s33 = ssub.s32 16, 16
      %34 = vsyncadd [#allocation6], %s33
      %s36 = sshll.u32 [#allocation5], 4
      %s37 = int_to_ptr.vmem [resolvable:$true] %s36
      %39 = dma.hbm_to_vmem [thread:$0]  %s2, 16, %s37, [#allocation6]
    $region13: #{_prenorm_ff_call.1} parent=1 // pred_fallthru
      _
    // Predicated region
    $region14: #{_prenorm_ff_call.1} parent=1 // pred_check
      _
    $region15: #{_prenorm_ff_call.1} parent=1 // pred_check_branch
      %41 = sbr.rel (0) target = $region17
    $region16: #{_prenorm_ff_call.1} parent=1 // pred_region
      %s43 = ssub.s32 512, 512
      %44 = vsyncadd [#allocation6], %s43
      %s45 = sshll.u32 [#allocation7], 4
      %s46 = int_to_ptr.vmem [resolvable:$true] %s45
      %51 = dma.hbm_to_vmem [thread:$0]  %s3, 512, %s46, [#allocation6], 128, 128, 8
    $region17: #{_prenorm_ff_call.1} parent=1 // pred_fallthru
      _
    // Predicated region
    $region18: #{_prenorm_ff_call.1} parent=1 // pred_check
      _
    $region19: #{_prenorm_ff_call.1} parent=1 // pred_check_branch
      %53 = sbr.rel (0) target = $region21
    $region20: #{_prenorm_ff_call.1} parent=1 // pred_region
      _
    $region21: #{_prenorm_ff_call.1} parent=1 // pred_fallthru
      _
    // Predicated region
    $region22: #{_prenorm_ff_call.1} parent=1 // pred_check
      _
    $region23: #{_prenorm_ff_call.1} parent=1 // pred_check_branch
      %55 = sbr.rel (0) target = $region25
    $region24: #{_prenorm_ff_call.1} parent=1 // pred_region
      %s57 = ssub.s32 4096, 4096
      %58 = vsyncadd [#allocation9], %s57
      %s59 = sshll.u32 [#allocation8], 4
      %s60 = int_to_ptr.vmem [resolvable:$true] %s59
      %65 = dma.hbm_to_vmem [thread:$0]  %s5, 4096, %s60, [#allocation9], 128, 128, 8
    $region25: #{_prenorm_ff_call.1} parent=1 // pred_fallthru
      _
    // Predicated region
    $region26: #{_prenorm_ff_call.1} parent=1 // pred_check
      _
    $region27: #{_prenorm_ff_call.1} parent=1 // pred_check_branch
      %67 = sbr.rel (0) target = $region29
    $region28: #{_prenorm_ff_call.1} parent=1 // pred_region
      _
    $region29: #{_prenorm_ff_call.1} parent=1 // pred_fallthru
      _
    // Predicated region
    $region30: #{_prenorm_ff_call.1} parent=1 // pred_check
      _
    $region31: #{_prenorm_ff_call.1} parent=1 // pred_check_branch
      %69 = sbr.rel (0) target = $region33
    $region32: #{_prenorm_ff_call.1} parent=1 // pred_region
      %70 = dma.done [#allocation3], 128
    $region33: #{_prenorm_ff_call.1} parent=1 // pred_fallthru
      _
    // Predicated region
    $region34: #{_prenorm_ff_call.1} parent=1 // pred_check
      _
    $region35: #{_prenorm_ff_call.1} parent=1 // pred_check_branch
      %72 = sbr.rel (0) target = $region37
    $region36: #{_prenorm_ff_call.1} parent=1 // pred_region
      %73 = dma.done [#allocation6], 16
    $region37: #{_prenorm_ff_call.1} parent=1 // pred_fallthru
      _
    // Predicated region
    $region38: #{_prenorm_ff_call.1} parent=1 // pred_check
      _
    $region39: #{_prenorm_ff_call.1} parent=1 // pred_check_branch
      %75 = sbr.rel (0) target = $region41
    $region40: #{_prenorm_ff_call.1} parent=1 // pred_region
      %76 = dma.done [#allocation6], 512
    $region41: #{_prenorm_ff_call.1} parent=1 // pred_fallthru
      _
    // Predicated region
    $region42: #{_prenorm_ff_call.1} parent=1 // pred_check
      _
    $region43: #{_prenorm_ff_call.1} parent=1 // pred_check_branch
      %78 = sbr.rel (0) target = $region45
    $region44: #{_prenorm_ff_call.1} parent=1 // pred_region
      %79 = dma.done [#allocation9], 4096
    $region45: #{_prenorm_ff_call.1} parent=1 // pred_fallthru
      _
    %v81 = vld [vmem:[#allocation2] sm:$0xf]
    %v82 = vld [vmem:[#allocation2 + $0x4] sm:$0xf]
    %v83 = vunpack.c.l.bf16 %v81
    %v84 = vunpack.c.l.bf16 %v82
    %vm85 = vcmask 261120
    %v86 = vsel %vm85, %v83, 0.0
    %87 = vadd.xlane.f32.xlu0 %v86
    %v88 = vpop.xlane.xlu0 %87
    %v89 = vsel %vm85, %v84, 0.0
    %90 = vadd.xlane.f32.xlu0 %v89
    %v91 = vpop.xlane.xlu0 %90
    %v92 = vrcp.pop 32.0
    %v93 = vmul.f32 %v88, %v92
    %v94 = vmul.f32 %v91, %v92
    %v95 = vmul.f32 %v83, %v83
    %v96 = vmul.f32 %v84, %v84
    %v97 = vsel %vm85, %v95, 0.0
    %98 = vadd.xlane.f32.xlu0 %v97
    %v99 = vpop.xlane.xlu0 %98
    %v100 = vsel %vm85, %v96, 0.0
    %101 = vadd.xlane.f32.xlu0 %v100
    %v102 = vpop.xlane.xlu0 %101
    %v103 = vmul.f32 %v99, %v92
    %v104 = vmul.f32 %v102, %v92
    %v105 = vmul.f32 %v93, %v93
    %v106 = vmul.f32 %v94, %v94
    %v107 = vsub.f32 %v103, %v105
    %v108 = vsub.f32 %v104, %v106
    %v109 = vmax.f32 %v107, 0.0
    %v110 = vmax.f32 %v108, 0.0
    %v111 = vsub.f32 %v83, %v93
    %v112 = vsub.f32 %v84, %v94
    %v113 = vadd.f32 %v109, 1e-05
    %v114 = vadd.f32 %v110, 1e-05
    %v115 = vrsqrt.pop %v113
    %v116 = vrsqrt.pop %v114
    %v117 = vmul.f32 %v111, %v115
    %v118 = vmul.f32 %v112, %v116
    %v119 = vld [vmem:[%s1] sm:$0x1]
    %v121 = vlaneseq
    %v122 = vshrl.u32 %v121, 7
    %v123 = vsub.s32 0, %v122
    %v124 = vrot.slane %v119, %v123
    %v126 = vmul.f32 %v117, %v124
    %v127 = vmul.f32 %v118, %v124
    %v128 = vld [vmem:[#allocation5] sm:$0x1]
    %v130 = vlaneseq
    %v131 = vshrl.u32 %v130, 7
    %v132 = vsub.s32 0, %v131
    %v133 = vrot.slane %v128, %v132
    %v135 = vadd.f32 %v126, %v133
    %v136 = vadd.f32 %v127, %v133
    %v137 = vpack.c.bf16 %v136, %v135
    %v138 = vld [vmem:[#allocation7] sm:$0xff]
    %v139 = vld [vmem:[#allocation7 + $0x8] sm:$0xff]
    %v140 = vld [vmem:[#allocation7 + $0x10] sm:$0xff]
    %v141 = vld [vmem:[#allocation7 + $0x18] sm:$0xff]
    %v142 = vld [vmem:[%s4] sm:$0x3]
    %v143 = vld [vmem:[#allocation8] sm:$0xff]
    %v144 = vld [vmem:[#allocation8 + $0x8] sm:$0xff]
    %v145 = vld [vmem:[#allocation8 + $0x10] sm:$0xff]
    %v146 = vld [vmem:[#allocation8 + $0x18] sm:$0xff]
    %v147 = vld [vmem:[#allocation8 + $0x20] sm:$0xff]
    %v148 = vld [vmem:[#allocation8 + $0x28] sm:$0xff]
    %v149 = vld [vmem:[#allocation8 + $0x30] sm:$0xff]
    %v150 = vld [vmem:[#allocation8 + $0x38] sm:$0xff]
    %v151 = vld [vmem:[#allocation8 + $0x40] sm:$0xff]
    %v152 = vld [vmem:[#allocation8 + $0x48] sm:$0xff]
    %v153 = vld [vmem:[#allocation8 + $0x50] sm:$0xff]
    %v154 = vld [vmem:[#allocation8 + $0x58] sm:$0xff]
    %v155 = vld [vmem:[#allocation8 + $0x60] sm:$0xff]
    %v156 = vld [vmem:[#allocation8 + $0x68] sm:$0xff]
    %v157 = vld [vmem:[#allocation8 + $0x70] sm:$0xff]
    %v158 = vld [vmem:[#allocation8 + $0x78] sm:$0xff]
    %v159 = vld [vmem:[#allocation8 + $0x80] sm:$0xff]
    %v160 = vld [vmem:[#allocation8 + $0x88] sm:$0xff]
    %v161 = vld [vmem:[#allocation8 + $0x90] sm:$0xff]
    %v162 = vld [vmem:[#allocation8 + $0x98] sm:$0xff]
    %v163 = vld [vmem:[#allocation8 + $0xa0] sm:$0xff]
    %v164 = vld [vmem:[#allocation8 + $0xa8] sm:$0xff]
    %v165 = vld [vmem:[#allocation8 + $0xb0] sm:$0xff]
    %v166 = vld [vmem:[#allocation8 + $0xb8] sm:$0xff]
    %v167 = vld [vmem:[#allocation8 + $0xc0] sm:$0xff]
    %v168 = vld [vmem:[#allocation8 + $0xc8] sm:$0xff]
    %v169 = vld [vmem:[#allocation8 + $0xd0] sm:$0xff]
    %v170 = vld [vmem:[#allocation8 + $0xd8] sm:$0xff]
    %v171 = vld [vmem:[#allocation8 + $0xe0] sm:$0xff]
    %v172 = vld [vmem:[#allocation8 + $0xe8] sm:$0xff]
    %v173 = vld [vmem:[#allocation8 + $0xf0] sm:$0xff]
    %v174 = vld [vmem:[#allocation8 + $0xf8] sm:$0xff]
    %v176 = vlaneseq
    %v177 = vshrl.u32 %v176, 7
    %v178 = vsub.s32 0, %v177
    %v179 = vrot.slane %v142, %v178
    %v180 = vlaneseq
    %v181 = vshrl.u32 %v180, 7
    %v182 = vsub.s32 1, %v181
    %v183 = vrot.slane %v142, %v182
    %v190 = vunpack.c.l.b16 %v138
    %v191 = vunpack.c.h.b16 %v138
    %v192 = vunpack.c.l.b16 %v139
    %v193 = vunpack.c.h.b16 %v139
    %v194 = vunpack.c.l.b16 %v140
    %v195 = vunpack.c.h.b16 %v140
    %v196 = vunpack.c.l.b16 %v141
    %v197 = vunpack.c.h.b16 %v141
    %v198 = vpack.c.b16 %v192, %v190
    %v199 = vpack.c.b16 %v193, %v191
    %v200 = vpack.c.b16 %v196, %v194
    %v201 = vpack.c.b16 %v197, %v195
    %v207 = vsel %vm85, %v137, 0
    %209 = vmatprep.subr.bf16.mxu0 0
    %210 = vmatpush1.bf16.msra.mxu0 0
    %211 = vmatprep.subr.bf16.mxu0 0
    %212 = vmatpush1.bf16.msra.mxu0 0
    %213 = vmatprep.subr.bf16.mxu0 0
    %214 = vmatpush1.bf16.msra.mxu0 0
    %215 = vmatprep.subr.bf16.mxu0 0
    %216 = vmatpush1.bf16.msra.mxu0 0
    %217 = vmatprep.subr.bf16.mxu0 0
    %218 = vmatpush1.bf16.msra.mxu0 0
    %219 = vmatprep.subr.bf16.mxu0 0
    %220 = vmatpush1.bf16.msra.mxu0 0
    %221 = vmatprep.subr.bf16.mxu0 %v201
    %222 = vmatpush1.bf16.msra.mxu0 %v200
    %223 = vmatprep.subr.bf16.mxu0 %v199
    %224 = vmatpush1.bf16.msra.mxu0 %v198
    %225 = vmatprep.subr.bf16.mxu0 0
    %226 = vmatpush2.bf16.msra.mxu0 0
    %227 = vmatprep.subr.bf16.mxu0 0
    %228 = vmatpush2.bf16.msra.mxu0 0
    %229 = vmatprep.subr.bf16.mxu0 0
    %230 = vmatpush2.bf16.msra.mxu0 0
    %231 = vmatprep.subr.bf16.mxu0 0
    %232 = vmatpush2.bf16.msra.mxu0 0
    %233 = vmatprep.subr.bf16.mxu0 0
    %234 = vmatpush2.bf16.msra.mxu0 0
    %235 = vmatprep.subr.bf16.mxu0 0
    %236 = vmatpush2.bf16.msra.mxu0 0
    %237 = vmatprep.subr.bf16.mxu0 0
    %238 = vmatpush2.bf16.msra.mxu0 0
    %239 = vmatprep.subr.bf16.mxu0 0
    %240 = vmatpush2.bf16.msra.mxu0 0
    %241 = vmatprep.mubr.bf16.mxu0 0
    %242 = vmatmul.mubr.bf16.gmra.mxu0 %v207
    %v243 = vpop.f32.mrf.mxu0
    %v244 = vadd.f32 %v179, %v243
    %v245 = vpop.f32.mrf.mxu0
    %v246 = vadd.f32 %v183, %v245
    %v247 = vpop.f32.mrf.mxu0
    %v248 = vadd.f32 %v179, %v247
    %v249 = vpop.f32.mrf.mxu0
    %v250 = vadd.f32 %v183, %v249
    %251 = vdwg.mxu0
    %v252 = vmul.f32 %v244, %v244
    %v253 = vmul.f32 %v246, %v246
    %v254 = vmul.f32 %v248, %v248
    %v255 = vmul.f32 %v250, %v250
    %v256 = vmul.f32 %v244, %v252
    %v257 = vmul.f32 %v246, %v253
    %v258 = vmul.f32 %v248, %v254
    %v259 = vmul.f32 %v250, %v255
    %v260 = vmul.f32 %v256, 0.044715
    %v261 = vmul.f32 %v257, 0.044715
    %v262 = vmul.f32 %v258, 0.044715
    %v263 = vmul.f32 %v259, 0.044715
    %v264 = vadd.f32 %v244, %v260
    %v265 = vadd.f32 %v246, %v261
    %v266 = vadd.f32 %v248, %v262
    %v267 = vadd.f32 %v250, %v263
    %v268 = vmul.f32 %v264, 0.7978846
    %v269 = vmul.f32 %v265, 0.7978846
    %v270 = vmul.f32 %v266, 0.7978846
    %v271 = vmul.f32 %v267, 0.7978846
    %v272 = vtanh.pop %v268
    %v273 = vtanh.pop %v269
    %v274 = vtanh.pop %v270
    %v275 = vtanh.pop %v271
    %v276 = vadd.f32 %v272, 1.0
    %v277 = vadd.f32 %v273, 1.0
    %v278 = vadd.f32 %v274, 1.0
    %v279 = vadd.f32 %v275, 1.0
    %v280 = vmul.f32 %v276, 0.5
    %v281 = vmul.f32 %v277, 0.5
    %v282 = vmul.f32 %v278, 0.5
    %v283 = vmul.f32 %v279, 0.5
    %v284 = vmul.f32 %v244, %v280
    %v285 = vmul.f32 %v246, %v281
    %v286 = vmul.f32 %v248, %v282
    %v287 = vmul.f32 %v250, %v283
    %v288 = vpack.c.bf16 %v286, %v284
    %v289 = vpack.c.bf16 %v287, %v285
    %v290 = vld [vmem:[%s6] sm:$0x3]
    %v292 = vlaneseq
    %v293 = vshrl.u32 %v292, 7
    %v294 = vsub.s32 0, %v293
    %v295 = vrot.slane %v290, %v294
    %v296 = vlaneseq
    %v297 = vshrl.u32 %v296, 7
    %v298 = vsub.s32 1, %v297
    %v299 = vrot.slane %v290, %v298
    %v334 = vunpack.c.l.b16 %v143
    %v335 = vunpack.c.h.b16 %v143
    %v336 = vunpack.c.l.b16 %v144
    %v337 = vunpack.c.h.b16 %v144
    %v338 = vunpack.c.l.b16 %v145
    %v339 = vunpack.c.h.b16 %v145
    %v340 = vunpack.c.l.b16 %v146
    %v341 = vunpack.c.h.b16 %v146
    %v342 = vunpack.c.l.b16 %v147
    %v343 = vunpack.c.h.b16 %v147
    %v344 = vunpack.c.l.b16 %v148
    %v345 = vunpack.c.h.b16 %v148
    %v346 = vunpack.c.l.b16 %v149
    %v347 = vunpack.c.h.b16 %v149
    %v348 = vunpack.c.l.b16 %v150
    %v349 = vunpack.c.h.b16 %v150
    %v350 = vunpack.c.l.b16 %v151
    %v351 = vunpack.c.h.b16 %v151
    %v352 = vunpack.c.l.b16 %v152
    %v353 = vunpack.c.h.b16 %v152
    %v354 = vunpack.c.l.b16 %v153
    %v355 = vunpack.c.h.b16 %v153
    %v356 = vunpack.c.l.b16 %v154
    %v357 = vunpack.c.h.b16 %v154
    %v358 = vunpack.c.l.b16 %v155
    %v359 = vunpack.c.h.b16 %v155
    %v360 = vunpack.c.l.b16 %v156
    %v361 = vunpack.c.h.b16 %v156
    %v362 = vunpack.c.l.b16 %v157
    %v363 = vunpack.c.h.b16 %v157
    %v364 = vunpack.c.l.b16 %v158
    %v365 = vunpack.c.h.b16 %v158
    %v366 = vunpack.c.l.b16 %v159
    %v367 = vunpack.c.h.b16 %v159
    %v368 = vunpack.c.l.b16 %v160
    %v369 = vunpack.c.h.b16 %v160
    %v370 = vunpack.c.l.b16 %v161
    %v371 = vunpack.c.h.b16 %v161
    %v372 = vunpack.c.l.b16 %v162
    %v373 = vunpack.c.h.b16 %v162
    %v374 = vunpack.c.l.b16 %v163
    %v375 = vunpack.c.h.b16 %v163
    %v376 = vunpack.c.l.b16 %v164
    %v377 = vunpack.c.h.b16 %v164
    %v378 = vunpack.c.l.b16 %v165
    %v379 = vunpack.c.h.b16 %v165
    %v380 = vunpack.c.l.b16 %v166
    %v381 = vunpack.c.h.b16 %v166
    %v382 = vunpack.c.l.b16 %v167
    %v383 = vunpack.c.h.b16 %v167
    %v384 = vunpack.c.l.b16 %v168
    %v385 = vunpack.c.h.b16 %v168
    %v386 = vunpack.c.l.b16 %v169
    %v387 = vunpack.c.h.b16 %v169
    %v388 = vunpack.c.l.b16 %v170
    %v389 = vunpack.c.h.b16 %v170
    %v390 = vunpack.c.l.b16 %v171
    %v391 = vunpack.c.h.b16 %v171
    %v392 = vunpack.c.l.b16 %v172
    %v393 = vunpack.c.h.b16 %v172
    %v394 = vunpack.c.l.b16 %v173
    %v395 = vunpack.c.h.b16 %v173
    %v396 = vunpack.c.l.b16 %v174
    %v397 = vunpack.c.h.b16 %v174
    %v398 = vpack.c.b16 %v336, %v334
    %v399 = vpack.c.b16 %v337, %v335
    %v400 = vpack.c.b16 %v340, %v338
    %v401 = vpack.c.b16 %v341, %v339
    %v402 = vpack.c.b16 %v344, %v342
    %v403 = vpack.c.b16 %v345, %v343
    %v404 = vpack.c.b16 %v348, %v346
    %v405 = vpack.c.b16 %v349, %v347
    %v406 = vpack.c.b16 %v352, %v350
    %v407 = vpack.c.b16 %v353, %v351
    %v408 = vpack.c.b16 %v356, %v354
    %v409 = vpack.c.b16 %v357, %v355
    %v410 = vpack.c.b16 %v360, %v358
    %v411 = vpack.c.b16 %v361, %v359
    %v412 = vpack.c.b16 %v364, %v362
    %v413 = vpack.c.b16 %v365, %v363
    %v414 = vpack.c.b16 %v368, %v366
    %v415 = vpack.c.b16 %v369, %v367
    %v416 = vpack.c.b16 %v372, %v370
    %v417 = vpack.c.b16 %v373, %v371
    %v418 = vpack.c.b16 %v376, %v374
    %v419 = vpack.c.b16 %v377, %v375
    %v420 = vpack.c.b16 %v380, %v378
    %v421 = vpack.c.b16 %v381, %v379
    %v422 = vpack.c.b16 %v384, %v382
    %v423 = vpack.c.b16 %v385, %v383
    %v424 = vpack.c.b16 %v388, %v386
    %v425 = vpack.c.b16 %v389, %v387
    %v426 = vpack.c.b16 %v392, %v390
    %v427 = vpack.c.b16 %v393, %v391
    %v428 = vpack.c.b16 %v396, %v394
    %v429 = vpack.c.b16 %v397, %v395
    %462 = vmatprep.subr.bf16.mxu0 %v413
    %463 = vmatpush1.bf16.msra.mxu0 %v412
    %464 = vmatprep.subr.bf16.mxu0 %v411
    %465 = vmatpush1.bf16.msra.mxu0 %v410
    %466 = vmatprep.subr.bf16.mxu0 %v409
    %467 = vmatpush1.bf16.msra.mxu0 %v408
    %468 = vmatprep.subr.bf16.mxu0 %v407
    %469 = vmatpush1.bf16.msra.mxu0 %v406
    %470 = vmatprep.subr.bf16.mxu0 %v405
    %471 = vmatpush1.bf16.msra.mxu0 %v404
    %472 = vmatprep.subr.bf16.mxu0 %v403
    %473 = vmatpush1.bf16.msra.mxu0 %v402
    %474 = vmatprep.subr.bf16.mxu0 %v401
    %475 = vmatpush1.bf16.msra.mxu0 %v400
    %476 = vmatprep.subr.bf16.mxu0 %v399
    %477 = vmatpush1.bf16.msra.mxu0 %v398
    %478 = vmatprep.subr.bf16.mxu0 %v429
    %479 = vmatpush2.bf16.msra.mxu0 %v428
    %480 = vmatprep.subr.bf16.mxu0 %v427
    %481 = vmatpush2.bf16.msra.mxu0 %v426
    %482 = vmatprep.subr.bf16.mxu0 %v425
    %483 = vmatpush2.bf16.msra.mxu0 %v424
    %484 = vmatprep.subr.bf16.mxu0 %v423
    %485 = vmatpush2.bf16.msra.mxu0 %v422
    %486 = vmatprep.subr.bf16.mxu0 %v421
    %487 = vmatpush2.bf16.msra.mxu0 %v420
    %488 = vmatprep.subr.bf16.mxu0 %v419
    %489 = vmatpush2.bf16.msra.mxu0 %v418
    %490 = vmatprep.subr.bf16.mxu0 %v417
    %491 = vmatpush2.bf16.msra.mxu0 %v416
    %492 = vmatprep.subr.bf16.mxu0 %v415
    %493 = vmatpush2.bf16.msra.mxu0 %v414
    %494 = vmatprep.mubr.bf16.mxu0 %v289
    %495 = vmatmul.mubr.bf16.gmra.mxu0 %v288
    %v496 = vpop.f32.mrf.mxu0
    %v497 = vadd.f32 %v295, %v496
    %v498 = vpop.f32.mrf.mxu0
    %v499 = vadd.f32 %v299, %v498
    %v500 = vpop.f32.mrf.mxu0
    %v501 = vadd.f32 %v295, %v500
    %v502 = vpop.f32.mrf.mxu0
    %v503 = vadd.f32 %v299, %v502
    %504 = vdwg.mxu0
    %505 = vst [vmem:[#allocation10] sm:$0xff] %v497
    %506 = vst [vmem:[#allocation10 + $0x8] sm:$0xff] %v499
    %507 = vst [vmem:[#allocation10 + $0x10] sm:$0xff] %v501
    %508 = vst [vmem:[#allocation10 + $0x18] sm:$0xff] %v503
    // Predicated region
    $region46: #{_prenorm_ff_call.1} parent=1 // pred_check
      _
    $region47: #{_prenorm_ff_call.1} parent=1 // pred_check_branch
      %510 = sbr.rel (0) target = $region49
    $region48: #{_prenorm_ff_call.1} parent=1 // pred_region
      %s512 = ssub.s32 512, 512
      %513 = vsyncadd [#allocation4], %s512
      %s514 = sshll.u32 [#allocation10], 4
      %s515 = int_to_ptr.vmem [resolvable:$true] %s514
      %520 = dma.vmem_to_hbm [thread:$0]  %s515, 512, %s7, [#allocation4], 256, 256, 16
    $region49: #{_prenorm_ff_call.1} parent=1 // pred_fallthru
      _
    // Predicated region
    $region50: #{_prenorm_ff_call.1} parent=1 // pred_check
      _
    $region51: #{_prenorm_ff_call.1} parent=1 // pred_check_branch
      %522 = sbr.rel (0) target = $region53
    $region52: #{_prenorm_ff_call.1} parent=1 // pred_region
      %523 = dma.done [#allocation4], 512
    $region53: #{_prenorm_ff_call.1} parent=1 // pred_fallthru
      _
    %524 = vsyncpa [#allocation3], 1
    %525 = vsyncpa [#allocation6], 1
    %526 = vsyncpa [#allocation9], 1
    %527 = vsyncpa [#allocation4], 1

</llo_original>
